<compile_context>
chip_gen: v5e
topology: v5e:2x2
jax: 0.10.0
libtpu: 0.0.40
codegen_flags: <defaults>
</compile_context>

<pallas_src>
import functools

import jax
import jax.numpy as jnp
from jax.experimental import pallas as pl
from jax.experimental.pallas import tpu as pltpu


def _round_up(x, m):
    return ((x + m - 1) // m) * m


def _mlp_kernel(n_linear, x_ref, w_ref, b_ref, o_ref):
    """x_ref: (bb, D); w_ref: (L, D, D); b_ref: (L, 1, D); o_ref: (bb, D)."""
    h = x_ref[...].astype(jnp.float32)
    for i in range(n_linear):
        w = w_ref[i]                        # (D, D), resident in VMEM
        b = b_ref[i].astype(jnp.float32)    # (1, D)
        h = jnp.dot(h.astype(w.dtype), w, preferred_element_type=jnp.float32) + b
        # ReLU only on the hidden MLPlayer layers: not after linear1st (i==0),
        # not after linearLast (i == n_linear - 1).
        if 0 < i < n_linear - 1:
            h = jnp.maximum(h, 0.0)
    o_ref[...] = h.astype(o_ref.dtype)


def mlp_general_pallas(x, weights, biases, *, block_b=256, param_dtype=None):
    """Fused MLP forward.

    x: (B, input_size) activations.
    weights[i]: (in_i, out_i)  -- already transposed vs. PyTorch's (out, in).
    biases[i]:  (1, out_i) or (out_i,).
    block_b: batch rows per grid step (rounded up to a multiple of 8).
    param_dtype: storage/MXU-operand dtype for the weights (None -> float32;
                 pass jnp.bfloat16 on v6e/v7x for full-rate MXU).
    """
    n_linear = len(weights)
    assert len(biases) == n_linear and n_linear >= 1
    batch, in_dim = x.shape
    out_dim = weights[-1].shape[1]
    out_dtype = x.dtype
    if param_dtype is None:
        param_dtype = jnp.float32

    # One lane-dense padded feature width shared by every layer.
    feat_dims = [in_dim] + [w.shape[1] for w in weights]
    D = max(_round_up(d, 128) for d in feat_dims)

    # Pack all (zero-padded) weights / biases into a single array each so the
    # parameters arrive as two DMAs and stay resident across the batch grid.
    wpack = jnp.zeros((n_linear, D, D), dtype=param_dtype)
    bpack = jnp.zeros((n_linear, 1, D), dtype=jnp.float32)
    for i, (w, b) in enumerate(zip(weights, biases)):
        wpack = wpack.at[i, : w.shape[0], : w.shape[1]].set(w.astype(param_dtype))
        bpack = bpack.at[i, :, : b.shape[-1]].set(
            b.reshape(1, -1).astype(jnp.float32)
        )

    # Batch tiling: pick a tile that is a multiple of 8 and pad the batch so
    # the grid divides evenly (padded rows are sliced off afterwards).
    bb = _round_up(min(block_b, max(batch, 8)), 8)
    b_pad = _round_up(batch, bb)
    grid = (b_pad // bb,)

    x_pad = jnp.zeros((b_pad, D), dtype=x.dtype).at[:batch, :in_dim].set(x)

    # Explicit VMEM budget: resident params (+pipeline copy) and
    # double-buffered input/output tiles, with headroom.  Capped well under
    # v7x's 64 MiB physical VMEM.
    param_bytes = (wpack.size * jnp.dtype(param_dtype).itemsize
                   + bpack.size * 4)
    tile_bytes = bb * D * (jnp.dtype(x.dtype).itemsize
                           + jnp.dtype(out_dtype).itemsize)
    vmem_need = 2 * param_bytes + 2 * tile_bytes
    vmem_limit = int(min(max(vmem_need + (4 << 20), 16 << 20), 48 << 20))

    kernel = functools.partial(_mlp_kernel, n_linear)
    out_full = pl.pallas_call(
        kernel,
        out_shape=jax.ShapeDtypeStruct((b_pad, D), out_dtype),
        grid=grid,
        in_specs=[
            pl.BlockSpec((bb, D), lambda i: (i, 0)),                 # x tile
            pl.BlockSpec((n_linear, D, D), lambda i: (0, 0, 0)),     # weights (resident)
            pl.BlockSpec((n_linear, 1, D), lambda i: (0, 0, 0)),     # biases  (resident)
        ],
        out_specs=pl.BlockSpec((bb, D), lambda i: (i, 0)),
        compiler_params=pltpu.CompilerParams(
            dimension_semantics=("parallel",),
            vmem_limit_bytes=vmem_limit,
        ),
    )(x_pad, wpack, bpack)

    # Lane-dense slab -> real output shape.
    return out_full[:batch, :out_dim]


# ----------------------------- test harness ------------------------------ #


def _build_mlp_params(key, input_size, hidden_size, n_layers, output_size):
    """PyTorch-style nn.Linear init: U(-1/sqrt(fan_in), 1/sqrt(fan_in)).

    Weights returned pre-transposed as (fan_in, fan_out); biases as (1, fan_out).
    Layer dims built exactly like MLP_general.__init__.
    """
    layer_dims = [(input_size, hidden_size[0])]
    for i in range(1, n_layers):
        layer_dims.append((hidden_size[i - 1], hidden_size[i]))
    layer_dims.append((hidden_size[-1], output_size))

    weights, biases = [], []
    for (fan_in, fan_out), pk in zip(layer_dims,
                                     jax.random.split(key, len(layer_dims))):
        kw, kb = jax.random.split(pk)
        bound = 1.0 / jnp.sqrt(jnp.float32(fan_in))
        weights.append(
            jax.random.uniform(kw, (fan_in, fan_out), jnp.float32, -bound, bound))
        biases.append(
            jax.random.uniform(kb, (1, fan_out), jnp.float32, -bound, bound))
    return weights, biases


def _reference_mlp(x, weights, biases):
    """Plain-JAX reference of MLP_general.forward (f32, highest precision)."""
    n_linear = len(weights)
    h = x
    for i, (w, b) in enumerate(zip(weights, biases)):
        h = jnp.dot(h, w, precision=jax.lax.Precision.HIGHEST) + b
        if 0 < i < n_linear - 1:
            h = jnp.maximum(h, 0.0)
    return h


if __name__ == "__main__":
    key = jax.random.PRNGKey(0)
    k1, k2, k3, k4 = jax.random.split(key, 4)

    # Case 1: module-default-sized config
    #   input_size=16, hidden_size=[32, 32], n_layers=2, output_size=1
    #   -> linears: 16->32 (linear1st), 32->32 (MLPlayer, ReLU), 32->1 (linearLast)
    x1 = jax.random.normal(k1, (8, 16), dtype=jnp.float32)
    w1, b1 = _build_mlp_params(k2, 16, [32, 32], 2, 1)
    out1 = jax.block_until_ready(mlp_general_pallas(x1, w1, b1))
    ref1 = _reference_mlp(x1, w1, b1)
    assert out1.shape == (8, 1), out1.shape
    assert jnp.allclose(out1, ref1, atol=1e-5, rtol=1e-5), (
        f"case1 mismatch, max abs err = {float(jnp.max(jnp.abs(out1 - ref1)))}")

    # Case 2: exercises the batch grid (multiple tiles) and wider hidden dims.
    #   input_size=48, hidden_size=[256, 256, 128], n_layers=3, output_size=10
    x2 = jax.random.normal(k3, (300, 48), dtype=jnp.float32)
    w2, b2 = _build_mlp_params(k4, 48, [256, 256, 128], 3, 10)
    out2 = jax.block_until_ready(mlp_general_pallas(x2, w2, b2, block_b=128))
    ref2 = _reference_mlp(x2, w2, b2)
    assert out2.shape == (300, 10), out2.shape
    assert jnp.allclose(out2, ref2, atol=1e-4, rtol=1e-4), (
        f"case2 mismatch, max abs err = {float(jnp.max(jnp.abs(out2 - ref2)))}")

    print("KERNEL_OK")
</pallas_src>

<mosaic_0001>
module attributes {stable_mosaic.version = 11 : i64} {
  func.func @_mlp_kernel(%arg0: i32, %arg1: memref<8x128xf32, #tpu.memory_space<vmem>>, %arg2: memref<3x128x128xf32, #tpu.memory_space<vmem>>, %arg3: memref<3x1x128xf32, #tpu.memory_space<vmem>>, %arg4: memref<8x128xf32, #tpu.memory_space<vmem>>) attributes {dimension_semantics = [#tpu.dimension_semantics<parallel>], iteration_bounds = array<i64: 1>, scalar_prefetch = 0 : i64, scratch_operands = 0 : i64, tpu.core_type = #tpu.core_type<tc>, window_params = [{transform_indices = @transform_0, window_bounds = array<i64: 8, 128>}, {pipeline_mode = #tpu.pipeline_mode<synchronous>, transform_indices = @transform_1, window_bounds = array<i64: 3, 128, 128>}, {pipeline_mode = #tpu.pipeline_mode<synchronous>, transform_indices = @transform_2, window_bounds = array<i64: 3, 1, 128>}, {transform_indices = @transform_3, window_bounds = array<i64: 8, 128>}]} {
    %c0 = arith.constant 0 : index
    %c0_0 = arith.constant 0 : index
    %0 = vector.load %arg1[%c0, %c0_0] : memref<8x128xf32, #tpu.memory_space<vmem>>, vector<8x128xf32>
    %c0_1 = arith.constant 0 : index
    %c0_2 = arith.constant 0 : index
    %c0_3 = arith.constant 0 : index
    %1 = vector.load %arg2[%c0_1, %c0_2, %c0_3] : memref<3x128x128xf32, #tpu.memory_space<vmem>>, vector<1x128x128xf32>
    %2 = vector.shape_cast %1 : vector<1x128x128xf32> to vector<128x128xf32>
    %c0_4 = arith.constant 0 : index
    %c0_5 = arith.constant 0 : index
    %c0_6 = arith.constant 0 : index
    %3 = vector.load %arg3[%c0_4, %c0_5, %c0_6] : memref<3x1x128xf32, #tpu.memory_space<vmem>>, vector<1x1x128xf32>
    %4 = vector.shape_cast %3 : vector<1x1x128xf32> to vector<1x128xf32>
    %cst = arith.constant dense<0.000000e+00> : vector<8x128xf32>
    %5 = tpu.matmul %0, %2, %cst {dimension_numbers = #tpu.dot_dimension_numbers<[1], [0], [0], [1], [0, 0, 1, 1], [], []>} : vector<8x128xf32>, vector<128x128xf32>, vector<8x128xf32> -> vector<8x128xf32>
    %6 = vector.broadcast %4 : vector<1x128xf32> to vector<8x128xf32>
    %7 = arith.addf %5, %6 : vector<8x128xf32>
    %c1 = arith.constant 1 : index
    %c0_7 = arith.constant 0 : index
    %c0_8 = arith.constant 0 : index
    %8 = vector.load %arg2[%c1, %c0_7, %c0_8] : memref<3x128x128xf32, #tpu.memory_space<vmem>>, vector<1x128x128xf32>
    %9 = vector.shape_cast %8 : vector<1x128x128xf32> to vector<128x128xf32>
    %c1_9 = arith.constant 1 : index
    %c0_10 = arith.constant 0 : index
    %c0_11 = arith.constant 0 : index
    %10 = vector.load %arg3[%c1_9, %c0_10, %c0_11] : memref<3x1x128xf32, #tpu.memory_space<vmem>>, vector<1x1x128xf32>
    %11 = vector.shape_cast %10 : vector<1x1x128xf32> to vector<1x128xf32>
    %cst_12 = arith.constant dense<0.000000e+00> : vector<8x128xf32>
    %12 = tpu.matmul %7, %9, %cst_12 {dimension_numbers = #tpu.dot_dimension_numbers<[1], [0], [0], [1], [0, 0, 1, 1], [], []>} : vector<8x128xf32>, vector<128x128xf32>, vector<8x128xf32> -> vector<8x128xf32>
    %13 = vector.broadcast %11 : vector<1x128xf32> to vector<8x128xf32>
    %14 = arith.addf %12, %13 : vector<8x128xf32>
    %cst_13 = arith.constant 0.000000e+00 : f32
    %15 = vector.broadcast %cst_13 : f32 to vector<8x128xf32>
    %16 = arith.maximumf %14, %15 : vector<8x128xf32>
    %c2 = arith.constant 2 : index
    %c0_14 = arith.constant 0 : index
    %c0_15 = arith.constant 0 : index
    %17 = vector.load %arg2[%c2, %c0_14, %c0_15] : memref<3x128x128xf32, #tpu.memory_space<vmem>>, vector<1x128x128xf32>
    %18 = vector.shape_cast %17 : vector<1x128x128xf32> to vector<128x128xf32>
    %c2_16 = arith.constant 2 : index
    %c0_17 = arith.constant 0 : index
    %c0_18 = arith.constant 0 : index
    %19 = vector.load %arg3[%c2_16, %c0_17, %c0_18] : memref<3x1x128xf32, #tpu.memory_space<vmem>>, vector<1x1x128xf32>
    %20 = vector.shape_cast %19 : vector<1x1x128xf32> to vector<1x128xf32>
    %cst_19 = arith.constant dense<0.000000e+00> : vector<8x128xf32>
    %21 = tpu.matmul %16, %18, %cst_19 {dimension_numbers = #tpu.dot_dimension_numbers<[1], [0], [0], [1], [0, 0, 1, 1], [], []>} : vector<8x128xf32>, vector<128x128xf32>, vector<8x128xf32> -> vector<8x128xf32>
    %22 = vector.broadcast %20 : vector<1x128xf32> to vector<8x128xf32>
    %23 = arith.addf %21, %22 : vector<8x128xf32>
    %c0_20 = arith.constant 0 : index
    %c0_21 = arith.constant 0 : index
    %24 = vector.load %arg4[%c0_20, %c0_21] : memref<8x128xf32, #tpu.memory_space<vmem>>, vector<8x128xf32>
    tpu.vector_store %arg4[%c0_20, %c0_21], %23 {strides = array<i32>} : memref<8x128xf32, #tpu.memory_space<vmem>>, vector<8x128xf32>,
    return
  }
  func.func @transform_0(%arg0: i32) -> (i32, i32) {
    %c0_i32 = arith.constant 0 : i32
    %c0_i32_0 = arith.constant 0 : i32
    return %arg0, %c0_i32 : i32, i32
  }
  func.func @transform_1(%arg0: i32) -> (i32, i32, i32) {
    %c0_i32 = arith.constant 0 : i32
    %c0_i32_0 = arith.constant 0 : i32
    %c0_i32_1 = arith.constant 0 : i32
    %c0_i32_2 = arith.constant 0 : i32
    return %c0_i32, %c0_i32_0, %c0_i32_1 : i32, i32, i32
  }
  func.func @transform_2(%arg0: i32) -> (i32, i32, i32) {
    %c0_i32 = arith.constant 0 : i32
    %c0_i32_0 = arith.constant 0 : i32
    %c0_i32_1 = arith.constant 0 : i32
    %c0_i32_2 = arith.constant 0 : i32
    return %c0_i32, %c0_i32_0, %c0_i32_1 : i32, i32, i32
  }
  func.func @transform_3(%arg0: i32) -> (i32, i32) {
    %c0_i32 = arith.constant 0 : i32
    %c0_i32_0 = arith.constant 0 : i32
    return %arg0, %c0_i32 : i32, i32
  }
}

</mosaic_0001>

<llo_original>
// kernel: tpu_custom_call.1
$region0: #{tpu_custom_call.1}
  #allocation0 [shape = 'u32[]', space=smem, size = 0x4, offset = 0x4, fixed_abs, tag = 'smem constant byte address 0x4 - core index']
  #allocation1 [shape = 'u32[72,128]{1,0:T(1,128)}', space=vmem, size = 0x9000, scoped, tag = 'internal scratch']
  %s0 = inlined_call_operand.hbm [shape: f32[8,128], index: 0, kind: input, shape index: {}]
  %s1 = inlined_call_operand.hbm [shape: f32[3,128,128], index: 1, kind: input, shape index: {}]
  %s2 = inlined_call_operand.hbm [shape: f32[3,1,128], index: 2, kind: input, shape index: {}]
  %s3 = inlined_call_operand.hbm [shape: f32[8,128], index: 3, kind: output, shape index: {}]
  %s4 = sld [smem:[#allocation0]]
  $region34: #{tpu_custom_call.1} parent=0
    _
  %s6 = ssub.s32 1, %s4
  %s7 = scalar_select 0, %s6, %s4
  $region1: #{tpu_custom_call.1} parent=0
    #allocation2 [shape = 'u8[4096]{0}', space=vmem, size = 0x1000, scoped, tag = 'input window, operand 0, single buffered']
    #allocation3 [shape = 's32[1]{0}', space=sflag, size = 0x4, scoped, tag = 'scoped memory for tpu_custom_call.1']
    #allocation4 [shape = 's32[1]{0}', space=sflag, size = 0x4, scoped, tag = 'scoped memory for tpu_custom_call.1']
    #allocation5 [shape = 'u8[196608]{0}', space=vmem, size = 0x30000, scoped, tag = 'input window, operand 1, single buffered']
    #allocation6 [shape = 's32[1]{0}', space=sflag, size = 0x4, scoped, tag = 'scoped memory for tpu_custom_call.1']
    #allocation7 [shape = 'u8[1536]{0}', space=vmem, size = 0x800, scoped, tag = 'input window, operand 2, single buffered']
    #allocation8 [shape = 'u8[4096]{0}', space=vmem, size = 0x1000, scoped, tag = 'output window, operand 0, single buffered']
    %8 = vsyncpa [#allocation3], 0
    %9 = vsyncpa [#allocation6], 0
    %10 = vsyncpa [#allocation4], 0
    // Predicated region
    $region2: #{tpu_custom_call.1} parent=1 // pred_check
      _
    $region3: #{tpu_custom_call.1} parent=1 // pred_check_branch
      %12 = sbr.rel (0) target = $region5
    $region4: #{tpu_custom_call.1} parent=1 // pred_region
      %14 = vsyncadd [#allocation3], 0
      %s16 = sshll.u32 %s0, 4
      %s17 = int_to_ptr.hbm [resolvable:$true] %s16
      %s18 = sshll.u32 [#allocation2], 4
      %s19 = int_to_ptr.vmem [resolvable:$true] %s18
      %21 = dma.hbm_to_vmem [thread:$0]  %s17, 128, %s19, [#allocation3]
    $region5: #{tpu_custom_call.1} parent=1 // pred_fallthru
      _
    // Predicated region
    $region6: #{tpu_custom_call.1} parent=1 // pred_check
      _
    $region7: #{tpu_custom_call.1} parent=1 // pred_check_branch
      %23 = sbr.rel (0) target = $region9
    $region8: #{tpu_custom_call.1} parent=1 // pred_region
      %25 = vsyncadd [#allocation6], 0
      %s26 = sshll.u32 %s1, 4
      %s27 = int_to_ptr.hbm [resolvable:$true] %s26
      %s28 = sshll.u32 [#allocation5], 4
      %s29 = int_to_ptr.vmem [resolvable:$true] %s28
      %34 = dma.hbm_to_vmem [thread:$0]  %s27, 6144, %s29, [#allocation6], 128, 128, 8
    $region9: #{tpu_custom_call.1} parent=1 // pred_fallthru
      _
    // Predicated region
    $region10: #{tpu_custom_call.1} parent=1 // pred_check
      _
    $region11: #{tpu_custom_call.1} parent=1 // pred_check_branch
      %36 = sbr.rel (0) target = $region13
    $region12: #{tpu_custom_call.1} parent=1 // pred_region
      %38 = vsyncadd [#allocation6], 0
      %s39 = sshll.u32 %s2, 4
      %s40 = int_to_ptr.hbm [resolvable:$true] %s39
      %s41 = sshll.u32 [#allocation7], 4
      %s42 = int_to_ptr.vmem [resolvable:$true] %s41
      %47 = dma.hbm_to_vmem [thread:$0]  %s40, 48, %s42, [#allocation6], 16, 16, 1
    $region13: #{tpu_custom_call.1} parent=1 // pred_fallthru
      _
    // Predicated region
    $region14: #{tpu_custom_call.1} parent=1 // pred_check
      _
    $region15: #{tpu_custom_call.1} parent=1 // pred_check_branch
      %49 = sbr.rel (0) target = $region17
    $region16: #{tpu_custom_call.1} parent=1 // pred_region
      %51 = dma.done [#allocation3], 128
    $region17: #{tpu_custom_call.1} parent=1 // pred_fallthru
      _
    // Predicated region
    $region18: #{tpu_custom_call.1} parent=1 // pred_check
      _
    $region19: #{tpu_custom_call.1} parent=1 // pred_check_branch
      %53 = sbr.rel (0) target = $region21
    $region20: #{tpu_custom_call.1} parent=1 // pred_region
      %55 = dma.done [#allocation6], 6144
    $region21: #{tpu_custom_call.1} parent=1 // pred_fallthru
      _
    // Predicated region
    $region22: #{tpu_custom_call.1} parent=1 // pred_check
      _
    $region23: #{tpu_custom_call.1} parent=1 // pred_check_branch
      %57 = sbr.rel (0) target = $region25
    $region24: #{tpu_custom_call.1} parent=1 // pred_region
      %59 = dma.done [#allocation6], 48
    $region25: #{tpu_custom_call.1} parent=1 // pred_fallthru
      _
    %v60 = vld [vmem:[#allocation2] sm:$0xff]
    %v61 = vld [vmem:[#allocation5] sm:$0xff]
    %v62 = vld [vmem:[#allocation5 + $0x8] sm:$0xff]
    %v63 = vld [vmem:[#allocation5 + $0x10] sm:$0xff]
    %v64 = vld [vmem:[#allocation5 + $0x18] sm:$0xff]
    %v65 = vld [vmem:[#allocation5 + $0x20] sm:$0xff]
    %v66 = vld [vmem:[#allocation5 + $0x28] sm:$0xff]
    %v67 = vld [vmem:[#allocation5 + $0x30] sm:$0xff]
    %v68 = vld [vmem:[#allocation5 + $0x38] sm:$0xff]
    %v69 = vld [vmem:[#allocation5 + $0x40] sm:$0xff]
    %v70 = vld [vmem:[#allocation5 + $0x48] sm:$0xff]
    %v71 = vld [vmem:[#allocation5 + $0x50] sm:$0xff]
    %v72 = vld [vmem:[#allocation5 + $0x58] sm:$0xff]
    %v73 = vld [vmem:[#allocation5 + $0x60] sm:$0xff]
    %v74 = vld [vmem:[#allocation5 + $0x68] sm:$0xff]
    %v75 = vld [vmem:[#allocation5 + $0x70] sm:$0xff]
    %v76 = vld [vmem:[#allocation5 + $0x78] sm:$0xff]
    %v77 = vld [vmem:[#allocation7] sm:$0x1]
    %v79 = vperm.slane %v77, 0
    %81 = vmatpush.msra.mxu0 %v76
    %82 = vmatpush.msra.mxu0 %v75
    %83 = vmatpush.msra.mxu0 %v74
    %84 = vmatpush.msra.mxu0 %v73
    %85 = vmatpush.msra.mxu0 %v72
    %86 = vmatpush.msra.mxu0 %v71
    %87 = vmatpush.msra.mxu0 %v70
    %88 = vmatpush.msra.mxu0 %v69
    %89 = vmatpush.msra.mxu0 %v68
    %90 = vmatpush.msra.mxu0 %v67
    %91 = vmatpush.msra.mxu0 %v66
    %92 = vmatpush.msra.mxu0 %v65
    %93 = vmatpush.msra.mxu0 %v64
    %94 = vmatpush.msra.mxu0 %v63
    %95 = vmatpush.msra.mxu0 %v62
    %96 = vmatpush.msra.mxu0 %v61
    %97 = vmatmul.f32.gmra.mxu0 %v60
    %v98 = vpop.f32.mrf.mxu0
    %v99 = vadd.f32 %v79, %v98
    %100 = vdwg.mxu0
    %s101 = scalar_lea.vmem [#allocation5], 128
    %v102 = vld [vmem:[%s101] sm:$0xff]
    %v103 = vld [vmem:[%s101 + $0x8] sm:$0xff]
    %v104 = vld [vmem:[%s101 + $0x10] sm:$0xff]
    %v105 = vld [vmem:[%s101 + $0x18] sm:$0xff]
    %v106 = vld [vmem:[%s101 + $0x20] sm:$0xff]
    %v107 = vld [vmem:[%s101 + $0x28] sm:$0xff]
    %v108 = vld [vmem:[%s101 + $0x30] sm:$0xff]
    %v109 = vld [vmem:[%s101 + $0x38] sm:$0xff]
    %v110 = vld [vmem:[%s101 + $0x40] sm:$0xff]
    %v111 = vld [vmem:[%s101 + $0x48] sm:$0xff]
    %v112 = vld [vmem:[%s101 + $0x50] sm:$0xff]
    %v113 = vld [vmem:[%s101 + $0x58] sm:$0xff]
    %v114 = vld [vmem:[%s101 + $0x60] sm:$0xff]
    %v115 = vld [vmem:[%s101 + $0x68] sm:$0xff]
    %v116 = vld [vmem:[%s101 + $0x70] sm:$0xff]
    %v117 = vld [vmem:[%s101 + $0x78] sm:$0xff]
    %s118 = scalar_lea.vmem [#allocation7], 1
    %v119 = vld [vmem:[%s118] sm:$0x1]
    %v121 = vperm.slane %v119, 0
    %123 = vmatpush.msra.mxu0 %v117
    %124 = vmatpush.msra.mxu0 %v116
    %125 = vmatpush.msra.mxu0 %v115
    %126 = vmatpush.msra.mxu0 %v114
    %127 = vmatpush.msra.mxu0 %v113
    %128 = vmatpush.msra.mxu0 %v112
    %129 = vmatpush.msra.mxu0 %v111
    %130 = vmatpush.msra.mxu0 %v110
    %131 = vmatpush.msra.mxu0 %v109
    %132 = vmatpush.msra.mxu0 %v108
    %133 = vmatpush.msra.mxu0 %v107
    %134 = vmatpush.msra.mxu0 %v106
    %135 = vmatpush.msra.mxu0 %v105
    %136 = vmatpush.msra.mxu0 %v104
    %137 = vmatpush.msra.mxu0 %v103
    %138 = vmatpush.msra.mxu0 %v102
    %139 = vmatmul.f32.gmra.mxu0 %v99
    %v140 = vpop.f32.mrf.mxu0
    %v141 = vadd.f32 %v121, %v140
    %142 = vdwg.mxu0
    %v143 = vmax.f32 %v141, 0.0
    %s144 = scalar_lea.vmem [#allocation5], 256
    %v145 = vld [vmem:[%s144] sm:$0xff]
    %v146 = vld [vmem:[%s144 + $0x8] sm:$0xff]
    %v147 = vld [vmem:[%s144 + $0x10] sm:$0xff]
    %v148 = vld [vmem:[%s144 + $0x18] sm:$0xff]
    %v149 = vld [vmem:[%s144 + $0x20] sm:$0xff]
    %v150 = vld [vmem:[%s144 + $0x28] sm:$0xff]
    %v151 = vld [vmem:[%s144 + $0x30] sm:$0xff]
    %v152 = vld [vmem:[%s144 + $0x38] sm:$0xff]
    %v153 = vld [vmem:[%s144 + $0x40] sm:$0xff]
    %v154 = vld [vmem:[%s144 + $0x48] sm:$0xff]
    %v155 = vld [vmem:[%s144 + $0x50] sm:$0xff]
    %v156 = vld [vmem:[%s144 + $0x58] sm:$0xff]
    %v157 = vld [vmem:[%s144 + $0x60] sm:$0xff]
    %v158 = vld [vmem:[%s144 + $0x68] sm:$0xff]
    %v159 = vld [vmem:[%s144 + $0x70] sm:$0xff]
    %v160 = vld [vmem:[%s144 + $0x78] sm:$0xff]
    %s161 = scalar_lea.vmem [#allocation7], 2
    %v162 = vld [vmem:[%s161] sm:$0x1]
    %v164 = vperm.slane %v162, 0
    %166 = vmatpush.msra.mxu0 %v160
    %167 = vmatpush.msra.mxu0 %v159
    %168 = vmatpush.msra.mxu0 %v158
    %169 = vmatpush.msra.mxu0 %v157
    %170 = vmatpush.msra.mxu0 %v156
    %171 = vmatpush.msra.mxu0 %v155
    %172 = vmatpush.msra.mxu0 %v154
    %173 = vmatpush.msra.mxu0 %v153
    %174 = vmatpush.msra.mxu0 %v152
    %175 = vmatpush.msra.mxu0 %v151
    %176 = vmatpush.msra.mxu0 %v150
    %177 = vmatpush.msra.mxu0 %v149
    %178 = vmatpush.msra.mxu0 %v148
    %179 = vmatpush.msra.mxu0 %v147
    %180 = vmatpush.msra.mxu0 %v146
    %181 = vmatpush.msra.mxu0 %v145
    %182 = vmatmul.f32.gmra.mxu0 %v143
    %v183 = vpop.f32.mrf.mxu0
    %v184 = vadd.f32 %v164, %v183
    %185 = vdwg.mxu0
    %186 = vst [vmem:[#allocation8] sm:$0xff] %v184
    // Predicated region
    $region26: #{tpu_custom_call.1} parent=1 // pred_check
      _
    $region27: #{tpu_custom_call.1} parent=1 // pred_check_branch
      %188 = sbr.rel (0) target = $region29
    $region28: #{tpu_custom_call.1} parent=1 // pred_region
      %190 = vsyncadd [#allocation4], 0
      %s192 = sshll.u32 [#allocation8], 4
      %s193 = int_to_ptr.vmem [resolvable:$true] %s192
      %s194 = sshll.u32 %s3, 4
      %s195 = int_to_ptr.hbm [resolvable:$true] %s194
      %197 = dma.vmem_to_hbm [thread:$0]  %s193, 128, %s195, [#allocation4]
    $region29: #{tpu_custom_call.1} parent=1 // pred_fallthru
      _
    // Predicated region
    $region30: #{tpu_custom_call.1} parent=1 // pred_check
      _
    $region31: #{tpu_custom_call.1} parent=1 // pred_check_branch
      %199 = sbr.rel (0) target = $region33
    $region32: #{tpu_custom_call.1} parent=1 // pred_region
      %201 = dma.done [#allocation4], 128
    $region33: #{tpu_custom_call.1} parent=1 // pred_fallthru
      _
    %202 = vsyncpa [#allocation3], 1
    %203 = vsyncpa [#allocation6], 1
    %204 = vsyncpa [#allocation4], 1

</llo_original>
